<compile_context>
chip_gen: v5e
topology: v5e:2x2
jax: 0.10.0
libtpu: 0.0.40
codegen_flags: <defaults>
</compile_context>

<pallas_src>
import jax
import jax.numpy as jnp
from jax.experimental import pallas as pl
from jax.experimental.pallas import tpu as pltpu

LANE = 128
SUBLANE = 8


def _round_up(x, m):
    return (x + m - 1) // m * m


def merge_fc_kernel(x1_ref, x2_ref,
                    w1a_ref, w1b_ref, b1_ref,
                    w2_ref, b2_ref,
                    w3_ref, b3_ref,
                    w4_ref, b4_ref,
                    o_ref):
    bf16 = jnp.bfloat16
    f32 = jnp.float32

    # fc1 on concat([x1, x2], dim=1) == x1 @ W1a + x2 @ W1b (concat never materialized).
    # Inputs are cast to bf16 in-kernel so the MXU runs at its bf16-native rate.
    h = (jnp.dot(x1_ref[...].astype(bf16), w1a_ref[...], preferred_element_type=f32)
         + jnp.dot(x2_ref[...].astype(bf16), w1b_ref[...], preferred_element_type=f32)
         + b1_ref[...])
    h = jnp.maximum(h, 0.0)
    # TODO(synk): nn.Dropout is identity in eval mode; training-mode dropout would
    # need pltpu.prng_seed + pltpu.stateful_bernoulli per layer.
    h = jnp.maximum(
        jnp.dot(h.astype(bf16), w2_ref[...], preferred_element_type=f32) + b2_ref[...],
        0.0)
    h = jnp.maximum(
        jnp.dot(h.astype(bf16), w3_ref[...], preferred_element_type=f32) + b3_ref[...],
        0.0)
    out = jnp.dot(h.astype(bf16), w4_ref[...], preferred_element_type=f32) + b4_ref[...]
    # Store transposed: (tb, D6p) -> (D6p, tb) so the output block is lane-dense
    # (batch on the 128-lane axis). The small transpose lands in the XLU slot.
    o_ref[...] = out.T.astype(o_ref.dtype)


def prepare_params(params, dim1, dim2):
    """One-time weight prep (hoisted out of the per-call path).

    params: PyTorch layout — w_i: [out, in], b_i: [out].
    Transposes to [in, out], splits W1 along the input axis to match
    concat([x1, x2]), zero-pads hidden dims to multiples of 128 lanes
    (output dim only to 8 sublanes — it is stored transposed), and casts
    all matmul weights to bf16 (biases stay f32).
    """
    d3 = params["w1"].shape[0]
    d4 = params["w2"].shape[0]
    d5 = params["w3"].shape[0]
    d6 = params["w4"].shape[0]
    d3p, d4p, d5p = (_round_up(d, LANE) for d in (d3, d4, d5))
    d6p = _round_up(d6, SUBLANE)

    f32, bf16 = jnp.float32, jnp.bfloat16
    w1_t = params["w1"].T.astype(f32)                                  # [dim1+dim2, d3]
    w1a = jnp.pad(w1_t[:dim1, :], ((0, 0), (0, d3p - d3))).astype(bf16)   # acts on x1
    w1b = jnp.pad(w1_t[dim1:, :], ((0, 0), (0, d3p - d3))).astype(bf16)   # acts on x2
    b1 = jnp.pad(params["b1"].astype(f32), (0, d3p - d3)).reshape(1, d3p)
    w2 = jnp.pad(params["w2"].T.astype(f32),
                 ((0, d3p - d3), (0, d4p - d4))).astype(bf16)
    b2 = jnp.pad(params["b2"].astype(f32), (0, d4p - d4)).reshape(1, d4p)
    w3 = jnp.pad(params["w3"].T.astype(f32),
                 ((0, d4p - d4), (0, d5p - d5))).astype(bf16)
    b3 = jnp.pad(params["b3"].astype(f32), (0, d5p - d5)).reshape(1, d5p)
    w4 = jnp.pad(params["w4"].T.astype(f32),
                 ((0, d5p - d5), (0, d6p - d6))).astype(bf16)
    b4 = jnp.pad(params["b4"].astype(f32), (0, d6p - d6)).reshape(1, d6p)

    return {
        "w1a": w1a, "w1b": w1b, "b1": b1,
        "w2": w2, "b2": b2,
        "w3": w3, "b3": b3,
        "w4": w4, "b4": b4,
        "out_dim": d6,
    }


def merge_layer_with_fc_forward(x1, x2, prep, *, block_b=256):
    """MergeLayer_with_fc.forward(x1, x2) in a single batch-tiled Pallas call."""
    B, d1 = x1.shape
    d2 = x2.shape[1]
    d3p = prep["w1a"].shape[1]
    d4p = prep["w2"].shape[1]
    d5p = prep["w3"].shape[1]
    d6p = prep["w4"].shape[1]
    d6 = prep["out_dim"]

    # Batch tile: multiple of 8 sublanes, capped. No wrapper-side input padding —
    # Pallas handles the ragged tail block (rows are independent; OOB output lanes
    # of the final block are never read back). Only the tiny transposed output
    # slab is rounded up to whole blocks on the lane axis.
    tb = min(block_b, _round_up(B, SUBLANE))
    nb = pl.cdiv(B, tb)
    bp_out = nb * tb

    def batch_spec(d):
        return pl.BlockSpec((tb, d), lambda i: (i, 0))

    def resident_spec(arr):
        # Whole-array block, constant block index -> stays in VMEM across all steps.
        return pl.BlockSpec(arr.shape, lambda i: (0, 0))

    flops = 2 * B * ((d1 + d2) * d3p + d3p * d4p + d4p * d5p + d5p * d6p)
    weight_bytes = (2 * ((d1 + d2) * d3p + d3p * d4p + d4p * d5p + d5p * d6p)
                    + 4 * (d3p + d4p + d5p + d6p))
    bytes_accessed = 4 * B * (d1 + d2) + 4 * bp_out * d6p + weight_bytes

    out_t = pl.pallas_call(
        merge_fc_kernel,
        out_shape=jax.ShapeDtypeStruct((d6p, bp_out), jnp.float32),
        grid=(nb,),
        in_specs=[
            batch_spec(d1), batch_spec(d2),
            resident_spec(prep["w1a"]), resident_spec(prep["w1b"]), resident_spec(prep["b1"]),
            resident_spec(prep["w2"]), resident_spec(prep["b2"]),
            resident_spec(prep["w3"]), resident_spec(prep["b3"]),
            resident_spec(prep["w4"]), resident_spec(prep["b4"]),
        ],
        out_specs=pl.BlockSpec((d6p, tb), lambda i: (0, i)),
        compiler_params=pltpu.CompilerParams(
            # On v7x, switch to (pltpu.CORE_PARALLEL,) if xprof shows one TC idle.
            dimension_semantics=("parallel",),
            vmem_limit_bytes=32 * 1024 * 1024,
        ),
        cost_estimate=pl.CostEstimate(
            flops=flops, transcendentals=0, bytes_accessed=bytes_accessed),
    )(x1, x2,
      prep["w1a"], prep["w1b"], prep["b1"],
      prep["w2"], prep["b2"],
      prep["w3"], prep["b3"],
      prep["w4"], prep["b4"])

    # Output was stored transposed (batch on lanes); un-transpose the tiny slab.
    return out_t[:d6, :B].T


def xavier_normal(key, out_dim, in_dim):
    std = (2.0 / (in_dim + out_dim)) ** 0.5
    return std * jax.random.normal(key, (out_dim, in_dim), dtype=jnp.float32)


if __name__ == "__main__":
    # Small shapes consistent with the module: MergeLayer_with_fc(dim1..dim6).
    B = 64
    dim1, dim2, dim3, dim4, dim5, dim6 = 32, 16, 64, 64, 32, 1

    key = jax.random.PRNGKey(0)
    (k_x1, k_x2,
     k_w1, k_b1, k_w2, k_b2, k_w3, k_b3, k_w4, k_b4) = jax.random.split(key, 10)

    x1 = jax.random.normal(k_x1, (B, dim1), dtype=jnp.float32)
    x2 = jax.random.normal(k_x2, (B, dim2), dtype=jnp.float32)

    params = {
        "w1": xavier_normal(k_w1, dim3, dim1 + dim2),
        "b1": 0.01 * jax.random.normal(k_b1, (dim3,), dtype=jnp.float32),
        "w2": xavier_normal(k_w2, dim4, dim3),
        "b2": 0.01 * jax.random.normal(k_b2, (dim4,), dtype=jnp.float32),
        "w3": xavier_normal(k_w3, dim5, dim4),
        "b3": 0.01 * jax.random.normal(k_b3, (dim5,), dtype=jnp.float32),
        "w4": xavier_normal(k_w4, dim6, dim5),
        "b4": 0.01 * jax.random.normal(k_b4, (dim6,), dtype=jnp.float32),
    }

    # One-time parameter preparation (hoisted out of the forward path).
    prep = prepare_params(params, dim1, dim2)

    out = merge_layer_with_fc_forward(x1, x2, prep)
    out = jax.block_until_ready(out)
    assert out.shape == (B, dim6)

    f32 = jnp.float32
    bf16 = jnp.bfloat16

    # Reference 1: pure-JAX with the same bf16 matmul casts (tight tolerance).
    hm = jnp.maximum(
        jnp.dot(x1.astype(bf16), prep["w1a"], preferred_element_type=f32)
        + jnp.dot(x2.astype(bf16), prep["w1b"], preferred_element_type=f32)
        + prep["b1"], 0.0)
    hm = jnp.maximum(
        jnp.dot(hm.astype(bf16), prep["w2"], preferred_element_type=f32) + prep["b2"], 0.0)
    hm = jnp.maximum(
        jnp.dot(hm.astype(bf16), prep["w3"], preferred_element_type=f32) + prep["b3"], 0.0)
    ref_matched = (jnp.dot(hm.astype(bf16), prep["w4"], preferred_element_type=f32)
                   + prep["b4"])[:, :dim6]
    assert jnp.allclose(out, ref_matched, atol=5e-3, rtol=5e-3)

    # Reference 2: exact f32 PyTorch semantics (eval mode: dropout = identity),
    # loose tolerance for the bf16 matmul datapath.
    x = jnp.concatenate([x1, x2], axis=1)
    h = jnp.maximum(x @ params["w1"].T + params["b1"], 0.0)
    h = jnp.maximum(h @ params["w2"].T + params["b2"], 0.0)
    h = jnp.maximum(h @ params["w3"].T + params["b3"], 0.0)
    ref_f32 = h @ params["w4"].T + params["b4"]
    assert jnp.allclose(out, ref_f32, atol=5e-2, rtol=5e-2)

    print("KERNEL_OK")
</pallas_src>

<mosaic_0001>
module attributes {stable_mosaic.version = 11 : i64} {
  func.func @merge_fc_kernel(%arg0: i32, %arg1: memref<64x32xf32, #tpu.memory_space<vmem>>, %arg2: memref<64x16xf32, #tpu.memory_space<vmem>>, %arg3: memref<32x128xbf16, #tpu.memory_space<vmem>>, %arg4: memref<16x128xbf16, #tpu.memory_space<vmem>>, %arg5: memref<1x128xf32, #tpu.memory_space<vmem>>, %arg6: memref<128x128xbf16, #tpu.memory_space<vmem>>, %arg7: memref<1x128xf32, #tpu.memory_space<vmem>>, %arg8: memref<128x128xbf16, #tpu.memory_space<vmem>>, %arg9: memref<1x128xf32, #tpu.memory_space<vmem>>, %arg10: memref<128x8xbf16, #tpu.memory_space<vmem>>, %arg11: memref<1x8xf32, #tpu.memory_space<vmem>>, %arg12: memref<8x64xf32, #tpu.memory_space<vmem>>) attributes {dimension_semantics = [#tpu.dimension_semantics<parallel>], iteration_bounds = array<i64: 1>, scalar_prefetch = 0 : i64, scratch_operands = 0 : i64, tpu.core_type = #tpu.core_type<tc>, window_params = [{transform_indices = @transform_0, window_bounds = array<i64: 64, 32>}, {transform_indices = @transform_1, window_bounds = array<i64: 64, 16>}, {pipeline_mode = #tpu.pipeline_mode<synchronous>, transform_indices = @transform_2, window_bounds = array<i64: 32, 128>}, {pipeline_mode = #tpu.pipeline_mode<synchronous>, transform_indices = @transform_3, window_bounds = array<i64: 16, 128>}, {pipeline_mode = #tpu.pipeline_mode<synchronous>, transform_indices = @transform_4, window_bounds = array<i64: 1, 128>}, {pipeline_mode = #tpu.pipeline_mode<synchronous>, transform_indices = @transform_5, window_bounds = array<i64: 128, 128>}, {pipeline_mode = #tpu.pipeline_mode<synchronous>, transform_indices = @transform_6, window_bounds = array<i64: 1, 128>}, {pipeline_mode = #tpu.pipeline_mode<synchronous>, transform_indices = @transform_7, window_bounds = array<i64: 128, 128>}, {pipeline_mode = #tpu.pipeline_mode<synchronous>, transform_indices = @transform_8, window_bounds = array<i64: 1, 128>}, {pipeline_mode = #tpu.pipeline_mode<synchronous>, transform_indices = @transform_9, window_bounds = array<i64: 128, 8>}, {pipeline_mode = #tpu.pipeline_mode<synchronous>, transform_indices = @transform_10, window_bounds = array<i64: 1, 8>}, {transform_indices = @transform_11, window_bounds = array<i64: 8, 64>}]} {
    %c0 = arith.constant 0 : index
    %c0_0 = arith.constant 0 : index
    %0 = vector.load %arg1[%c0, %c0_0] : memref<64x32xf32, #tpu.memory_space<vmem>>, vector<64x32xf32>
    %1 = arith.truncf %0 : vector<64x32xf32> to vector<64x32xbf16>
    %c0_1 = arith.constant 0 : index
    %c0_2 = arith.constant 0 : index
    %2 = vector.load %arg3[%c0_1, %c0_2] : memref<32x128xbf16, #tpu.memory_space<vmem>>, vector<32x128xbf16>
    %cst = arith.constant dense<0.000000e+00> : vector<64x128xf32>
    %3 = tpu.matmul %1, %2, %cst {dimension_numbers = #tpu.dot_dimension_numbers<[1], [0], [0], [1], [0, 0, 1, 1], [], []>} : vector<64x32xbf16>, vector<32x128xbf16>, vector<64x128xf32> -> vector<64x128xf32>
    %c0_3 = arith.constant 0 : index
    %c0_4 = arith.constant 0 : index
    %4 = vector.load %arg2[%c0_3, %c0_4] : memref<64x16xf32, #tpu.memory_space<vmem>>, vector<64x16xf32>
    %5 = arith.truncf %4 : vector<64x16xf32> to vector<64x16xbf16>
    %c0_5 = arith.constant 0 : index
    %c0_6 = arith.constant 0 : index
    %6 = vector.load %arg4[%c0_5, %c0_6] : memref<16x128xbf16, #tpu.memory_space<vmem>>, vector<16x128xbf16>
    %cst_7 = arith.constant dense<0.000000e+00> : vector<64x128xf32>
    %7 = tpu.matmul %5, %6, %cst_7 {dimension_numbers = #tpu.dot_dimension_numbers<[1], [0], [0], [1], [0, 0, 1, 1], [], []>} : vector<64x16xbf16>, vector<16x128xbf16>, vector<64x128xf32> -> vector<64x128xf32>
    %8 = arith.addf %3, %7 : vector<64x128xf32>
    %c0_8 = arith.constant 0 : index
    %c0_9 = arith.constant 0 : index
    %9 = vector.load %arg5[%c0_8, %c0_9] : memref<1x128xf32, #tpu.memory_space<vmem>>, vector<1x128xf32>
    %10 = vector.broadcast %9 : vector<1x128xf32> to vector<64x128xf32>
    %11 = arith.addf %8, %10 : vector<64x128xf32>
    %cst_10 = arith.constant 0.000000e+00 : f32
    %12 = vector.broadcast %cst_10 : f32 to vector<64x128xf32>
    %13 = arith.maximumf %11, %12 : vector<64x128xf32>
    %14 = arith.truncf %13 : vector<64x128xf32> to vector<64x128xbf16>
    %c0_11 = arith.constant 0 : index
    %c0_12 = arith.constant 0 : index
    %15 = vector.load %arg6[%c0_11, %c0_12] : memref<128x128xbf16, #tpu.memory_space<vmem>>, vector<128x128xbf16>
    %cst_13 = arith.constant dense<0.000000e+00> : vector<64x128xf32>
    %16 = tpu.matmul %14, %15, %cst_13 {dimension_numbers = #tpu.dot_dimension_numbers<[1], [0], [0], [1], [0, 0, 1, 1], [], []>} : vector<64x128xbf16>, vector<128x128xbf16>, vector<64x128xf32> -> vector<64x128xf32>
    %c0_14 = arith.constant 0 : index
    %c0_15 = arith.constant 0 : index
    %17 = vector.load %arg7[%c0_14, %c0_15] : memref<1x128xf32, #tpu.memory_space<vmem>>, vector<1x128xf32>
    %18 = vector.broadcast %17 : vector<1x128xf32> to vector<64x128xf32>
    %19 = arith.addf %16, %18 : vector<64x128xf32>
    %cst_16 = arith.constant 0.000000e+00 : f32
    %20 = vector.broadcast %cst_16 : f32 to vector<64x128xf32>
    %21 = arith.maximumf %19, %20 : vector<64x128xf32>
    %22 = arith.truncf %21 : vector<64x128xf32> to vector<64x128xbf16>
    %c0_17 = arith.constant 0 : index
    %c0_18 = arith.constant 0 : index
    %23 = vector.load %arg8[%c0_17, %c0_18] : memref<128x128xbf16, #tpu.memory_space<vmem>>, vector<128x128xbf16>
    %cst_19 = arith.constant dense<0.000000e+00> : vector<64x128xf32>
    %24 = tpu.matmul %22, %23, %cst_19 {dimension_numbers = #tpu.dot_dimension_numbers<[1], [0], [0], [1], [0, 0, 1, 1], [], []>} : vector<64x128xbf16>, vector<128x128xbf16>, vector<64x128xf32> -> vector<64x128xf32>
    %c0_20 = arith.constant 0 : index
    %c0_21 = arith.constant 0 : index
    %25 = vector.load %arg9[%c0_20, %c0_21] : memref<1x128xf32, #tpu.memory_space<vmem>>, vector<1x128xf32>
    %26 = vector.broadcast %25 : vector<1x128xf32> to vector<64x128xf32>
    %27 = arith.addf %24, %26 : vector<64x128xf32>
    %cst_22 = arith.constant 0.000000e+00 : f32
    %28 = vector.broadcast %cst_22 : f32 to vector<64x128xf32>
    %29 = arith.maximumf %27, %28 : vector<64x128xf32>
    %30 = arith.truncf %29 : vector<64x128xf32> to vector<64x128xbf16>
    %c0_23 = arith.constant 0 : index
    %c0_24 = arith.constant 0 : index
    %31 = vector.load %arg10[%c0_23, %c0_24] : memref<128x8xbf16, #tpu.memory_space<vmem>>, vector<128x8xbf16>
    %cst_25 = arith.constant dense<0.000000e+00> : vector<64x8xf32>
    %32 = tpu.matmul %30, %31, %cst_25 {dimension_numbers = #tpu.dot_dimension_numbers<[1], [0], [0], [1], [0, 0, 1, 1], [], []>} : vector<64x128xbf16>, vector<128x8xbf16>, vector<64x8xf32> -> vector<64x8xf32>
    %c0_26 = arith.constant 0 : index
    %c0_27 = arith.constant 0 : index
    %33 = vector.load %arg11[%c0_26, %c0_27] : memref<1x8xf32, #tpu.memory_space<vmem>>, vector<1x8xf32>
    %34 = vector.broadcast %33 : vector<1x8xf32> to vector<64x8xf32>
    %35 = arith.addf %32, %34 : vector<64x8xf32>
    %36 = tpu.transpose %35, [1, 0] : vector<64x8xf32> -> vector<8x64xf32>
    %c0_28 = arith.constant 0 : index
    %c0_29 = arith.constant 0 : index
    %37 = vector.load %arg12[%c0_28, %c0_29] : memref<8x64xf32, #tpu.memory_space<vmem>>, vector<8x64xf32>
    tpu.vector_store %arg12[%c0_28, %c0_29], %36 {strides = array<i32>} : memref<8x64xf32, #tpu.memory_space<vmem>>, vector<8x64xf32>,
    return
  }
  func.func @transform_0(%arg0: i32) -> (i32, i32) {
    %c0_i32 = arith.constant 0 : i32
    %c0_i32_0 = arith.constant 0 : i32
    return %arg0, %c0_i32 : i32, i32
  }
  func.func @transform_1(%arg0: i32) -> (i32, i32) {
    %c0_i32 = arith.constant 0 : i32
    %c0_i32_0 = arith.constant 0 : i32
    return %arg0, %c0_i32 : i32, i32
  }
  func.func @transform_2(%arg0: i32) -> (i32, i32) {
    %c0_i32 = arith.constant 0 : i32
    %c0_i32_0 = arith.constant 0 : i32
    %c0_i32_1 = arith.constant 0 : i32
    return %c0_i32, %c0_i32_0 : i32, i32
  }
  func.func @transform_3(%arg0: i32) -> (i32, i32) {
    %c0_i32 = arith.constant 0 : i32
    %c0_i32_0 = arith.constant 0 : i32
    %c0_i32_1 = arith.constant 0 : i32
    return %c0_i32, %c0_i32_0 : i32, i32
  }
  func.func @transform_4(%arg0: i32) -> (i32, i32) {
    %c0_i32 = arith.constant 0 : i32
    %c0_i32_0 = arith.constant 0 : i32
    %c0_i32_1 = arith.constant 0 : i32
    return %c0_i32, %c0_i32_0 : i32, i32
  }
  func.func @transform_5(%arg0: i32) -> (i32, i32) {
    %c0_i32 = arith.constant 0 : i32
    %c0_i32_0 = arith.constant 0 : i32
    %c0_i32_1 = arith.constant 0 : i32
    return %c0_i32, %c0_i32_0 : i32, i32
  }
  func.func @transform_6(%arg0: i32) -> (i32, i32) {
    %c0_i32 = arith.constant 0 : i32
    %c0_i32_0 = arith.constant 0 : i32
    %c0_i32_1 = arith.constant 0 : i32
    return %c0_i32, %c0_i32_0 : i32, i32
  }
  func.func @transform_7(%arg0: i32) -> (i32, i32) {
    %c0_i32 = arith.constant 0 : i32
    %c0_i32_0 = arith.constant 0 : i32
    %c0_i32_1 = arith.constant 0 : i32
    return %c0_i32, %c0_i32_0 : i32, i32
  }
  func.func @transform_8(%arg0: i32) -> (i32, i32) {
    %c0_i32 = arith.constant 0 : i32
    %c0_i32_0 = arith.constant 0 : i32
    %c0_i32_1 = arith.constant 0 : i32
    return %c0_i32, %c0_i32_0 : i32, i32
  }
  func.func @transform_9(%arg0: i32) -> (i32, i32) {
    %c0_i32 = arith.constant 0 : i32
    %c0_i32_0 = arith.constant 0 : i32
    %c0_i32_1 = arith.constant 0 : i32
    return %c0_i32, %c0_i32_0 : i32, i32
  }
  func.func @transform_10(%arg0: i32) -> (i32, i32) {
    %c0_i32 = arith.constant 0 : i32
    %c0_i32_0 = arith.constant 0 : i32
    %c0_i32_1 = arith.constant 0 : i32
    return %c0_i32, %c0_i32_0 : i32, i32
  }
  func.func @transform_11(%arg0: i32) -> (i32, i32) {
    %c0_i32 = arith.constant 0 : i32
    %c0_i32_0 = arith.constant 0 : i32
    return %c0_i32, %arg0 : i32, i32
  }
}

</mosaic_0001>

<llo_original>
// kernel: tpu_custom_call.1
$region0: #{tpu_custom_call.1}
  #allocation0 [shape = 'u32[]', space=smem, size = 0x4, offset = 0x4, fixed_abs, tag = 'smem constant byte address 0x4 - core index']
  #allocation1 [shape = 'u32[72,128]{1,0:T(1,128)}', space=vmem, size = 0x9000, scoped, tag = 'internal scratch']
  %s0 = inlined_call_operand.vmem [shape: f32[64,32], index: 0, kind: input, shape index: {}]
  %s1 = inlined_call_operand.vmem [shape: f32[64,16], index: 1, kind: input, shape index: {}]
  %s2 = inlined_call_operand.vmem [shape: bf16[32,128], index: 2, kind: input, shape index: {}]
  %s3 = inlined_call_operand.vmem [shape: bf16[16,128], index: 3, kind: input, shape index: {}]
  %s4 = inlined_call_operand.vmem [shape: f32[1,128], index: 4, kind: input, shape index: {}]
  %s5 = inlined_call_operand.vmem [shape: bf16[128,128], index: 5, kind: input, shape index: {}]
  %s6 = inlined_call_operand.vmem [shape: f32[1,128], index: 6, kind: input, shape index: {}]
  %s7 = inlined_call_operand.vmem [shape: bf16[128,128], index: 7, kind: input, shape index: {}]
  %s8 = inlined_call_operand.vmem [shape: f32[1,128], index: 8, kind: input, shape index: {}]
  %s9 = inlined_call_operand.vmem [shape: bf16[128,8], index: 9, kind: input, shape index: {}]
  %s10 = inlined_call_operand.vmem [shape: f32[1,8], index: 10, kind: input, shape index: {}]
  %s11 = inlined_call_operand.hbm [shape: f32[8,64], index: 11, kind: output, shape index: {}]
  %s12 = sld [smem:[#allocation0]]
  $region54: #{tpu_custom_call.1} parent=0
    _
  %s14 = ssub.s32 1, %s12
  %s15 = scalar_select 0, %s14, %s12
  $region1: #{tpu_custom_call.1} parent=0
    #allocation2 [shape = 'u8[4096]{0}', space=vmem, size = 0x1000, scoped, tag = 'output window, operand 0, single buffered']
    #allocation3 [shape = 's32[1]{0}', space=sflag, size = 0x4, scoped, tag = 'scoped memory for tpu_custom_call.1']
    %16 = vsyncpa [#allocation3], 0
    // Predicated region
    $region2: #{tpu_custom_call.1} parent=1 // pred_check
      _
    $region3: #{tpu_custom_call.1} parent=1 // pred_check_branch
      %18 = sbr.rel (0) target = $region5
    $region4: #{tpu_custom_call.1} parent=1 // pred_region
      _
    $region5: #{tpu_custom_call.1} parent=1 // pred_fallthru
      _
    // Predicated region
    $region6: #{tpu_custom_call.1} parent=1 // pred_check
      _
    $region7: #{tpu_custom_call.1} parent=1 // pred_check_branch
      %20 = sbr.rel (0) target = $region9
    $region8: #{tpu_custom_call.1} parent=1 // pred_region
      _
    $region9: #{tpu_custom_call.1} parent=1 // pred_fallthru
      _
    // Predicated region
    $region10: #{tpu_custom_call.1} parent=1 // pred_check
      _
    $region11: #{tpu_custom_call.1} parent=1 // pred_check_branch
      %22 = sbr.rel (0) target = $region13
    $region12: #{tpu_custom_call.1} parent=1 // pred_region
      _
    $region13: #{tpu_custom_call.1} parent=1 // pred_fallthru
      _
    // Predicated region
    $region14: #{tpu_custom_call.1} parent=1 // pred_check
      _
    $region15: #{tpu_custom_call.1} parent=1 // pred_check_branch
      %24 = sbr.rel (0) target = $region17
    $region16: #{tpu_custom_call.1} parent=1 // pred_region
      _
    $region17: #{tpu_custom_call.1} parent=1 // pred_fallthru
      _
    // Predicated region
    $region18: #{tpu_custom_call.1} parent=1 // pred_check
      _
    $region19: #{tpu_custom_call.1} parent=1 // pred_check_branch
      %26 = sbr.rel (0) target = $region21
    $region20: #{tpu_custom_call.1} parent=1 // pred_region
      _
    $region21: #{tpu_custom_call.1} parent=1 // pred_fallthru
      _
    // Predicated region
    $region22: #{tpu_custom_call.1} parent=1 // pred_check
      _
    $region23: #{tpu_custom_call.1} parent=1 // pred_check_branch
      %28 = sbr.rel (0) target = $region25
    $region24: #{tpu_custom_call.1} parent=1 // pred_region
      _
    $region25: #{tpu_custom_call.1} parent=1 // pred_fallthru
      _
    // Predicated region
    $region26: #{tpu_custom_call.1} parent=1 // pred_check
      _
    $region27: #{tpu_custom_call.1} parent=1 // pred_check_branch
      %30 = sbr.rel (0) target = $region29
    $region28: #{tpu_custom_call.1} parent=1 // pred_region
      _
    $region29: #{tpu_custom_call.1} parent=1 // pred_fallthru
      _
    // Predicated region
    $region30: #{tpu_custom_call.1} parent=1 // pred_check
      _
    $region31: #{tpu_custom_call.1} parent=1 // pred_check_branch
      %32 = sbr.rel (0) target = $region33
    $region32: #{tpu_custom_call.1} parent=1 // pred_region
      _
    $region33: #{tpu_custom_call.1} parent=1 // pred_fallthru
      _
    // Predicated region
    $region34: #{tpu_custom_call.1} parent=1 // pred_check
      _
    $region35: #{tpu_custom_call.1} parent=1 // pred_check_branch
      %34 = sbr.rel (0) target = $region37
    $region36: #{tpu_custom_call.1} parent=1 // pred_region
      _
    $region37: #{tpu_custom_call.1} parent=1 // pred_fallthru
      _
    // Predicated region
    $region38: #{tpu_custom_call.1} parent=1 // pred_check
      _
    $region39: #{tpu_custom_call.1} parent=1 // pred_check_branch
      %36 = sbr.rel (0) target = $region41
    $region40: #{tpu_custom_call.1} parent=1 // pred_region
      _
    $region41: #{tpu_custom_call.1} parent=1 // pred_fallthru
      _
    // Predicated region
    $region42: #{tpu_custom_call.1} parent=1 // pred_check
      _
    $region43: #{tpu_custom_call.1} parent=1 // pred_check_branch
      %38 = sbr.rel (0) target = $region45
    $region44: #{tpu_custom_call.1} parent=1 // pred_region
      _
    $region45: #{tpu_custom_call.1} parent=1 // pred_fallthru
      _
    %v40 = vld [vmem:[%s0] sm:$0xff]
    %v41 = vld [vmem:[%s0 + $0x8] sm:$0xff]
    %v42 = vld [vmem:[%s0 + $0x10] sm:$0xff]
    %v43 = vld [vmem:[%s0 + $0x18] sm:$0xff]
    %v44 = vld [vmem:[%s0 + $0x20] sm:$0xff]
    %v45 = vld [vmem:[%s0 + $0x28] sm:$0xff]
    %v46 = vld [vmem:[%s0 + $0x30] sm:$0xff]
    %v47 = vld [vmem:[%s0 + $0x38] sm:$0xff]
    %v48 = vpack.c.bf16 %v41, %v40
    %v49 = vpack.c.bf16 %v43, %v42
    %v50 = vpack.c.bf16 %v45, %v44
    %v51 = vpack.c.bf16 %v47, %v46
    %v52 = vld [vmem:[%s2] sm:$0xf]
    %v53 = vld [vmem:[%s2 + $0x4] sm:$0xf]
    %v54 = vld [vmem:[%s2 + $0x8] sm:$0xf]
    %v55 = vld [vmem:[%s2 + $0xc] sm:$0xf]
    %v56 = vld [vmem:[%s1] sm:$0xff]
    %v57 = vld [vmem:[%s1 + $0x8] sm:$0xff]
    %v58 = vld [vmem:[%s1 + $0x10] sm:$0xff]
    %v59 = vld [vmem:[%s1 + $0x18] sm:$0xff]
    %v60 = vld [vmem:[%s1 + $0x20] sm:$0xff]
    %v61 = vld [vmem:[%s1 + $0x28] sm:$0xff]
    %v62 = vld [vmem:[%s1 + $0x30] sm:$0xff]
    %v63 = vld [vmem:[%s1 + $0x38] sm:$0xff]
    %v64 = vpack.c.bf16 %v57, %v56
    %v65 = vpack.c.bf16 %v59, %v58
    %v66 = vpack.c.bf16 %v61, %v60
    %v67 = vpack.c.bf16 %v63, %v62
    %v68 = vld [vmem:[%s3] sm:$0xf]
    %v69 = vld [vmem:[%s3 + $0x4] sm:$0xf]
    %v72 = vunpack.c.l.b16 %v68
    %v73 = vunpack.c.l.b16 %v69
    %v74 = vpack.c.b16 %v73, %v72
    %vm76 = vcmask 130048
    %v78 = vsel %vm76, %v64, 0
    %v81 = vsel %vm76, %v65, 0
    %v84 = vsel %vm76, %v66, 0
    %v87 = vsel %vm76, %v67, 0
    %89 = vmatpush.bf16.msra.mxu0 0
    %90 = vmatpush.bf16.msra.mxu0 0
    %91 = vmatpush.bf16.msra.mxu0 0
    %92 = vmatpush.bf16.msra.mxu0 0
    %93 = vmatpush.bf16.msra.mxu0 0
    %94 = vmatpush.bf16.msra.mxu0 0
    %95 = vmatpush.bf16.msra.mxu0 0
    %96 = vmatpush.bf16.msra.mxu0 %v74
    %97 = vmatmul.bf16.gmra.mxu0 %v78
    %v98 = vpop.f32.mrf.mxu0
    %v99 = vadd.f32 0.0, %v98
    %v100 = vpop.f32.mrf.mxu0
    %v101 = vadd.f32 0.0, %v100
    %102 = vmatmul.bf16.gmra.mxu0 %v81
    %v103 = vpop.f32.mrf.mxu0
    %v104 = vadd.f32 0.0, %v103
    %v105 = vpop.f32.mrf.mxu0
    %v106 = vadd.f32 0.0, %v105
    %107 = vmatmul.bf16.gmra.mxu0 %v84
    %v108 = vpop.f32.mrf.mxu0
    %v109 = vadd.f32 0.0, %v108
    %v110 = vpop.f32.mrf.mxu0
    %v111 = vadd.f32 0.0, %v110
    %112 = vmatmul.bf16.gmra.mxu0 %v87
    %v113 = vpop.f32.mrf.mxu0
    %v114 = vadd.f32 0.0, %v113
    %v115 = vpop.f32.mrf.mxu0
    %v116 = vadd.f32 0.0, %v115
    %117 = vdwg.mxu0
    %v122 = vunpack.c.l.b16 %v52
    %v123 = vunpack.c.l.b16 %v53
    %v124 = vunpack.c.l.b16 %v54
    %v125 = vunpack.c.l.b16 %v55
    %v126 = vpack.c.b16 %v123, %v122
    %v127 = vpack.c.b16 %v125, %v124
    %vm130 = vcmask 261120
    %v132 = vsel %vm130, %v48, 0
    %v135 = vsel %vm130, %v49, 0
    %v138 = vsel %vm130, %v50, 0
    %v141 = vsel %vm130, %v51, 0
    %143 = vmatpush.bf16.msra.mxu0 0
    %144 = vmatpush.bf16.msra.mxu0 0
    %145 = vmatpush.bf16.msra.mxu0 0
    %146 = vmatpush.bf16.msra.mxu0 0
    %147 = vmatpush.bf16.msra.mxu0 0
    %148 = vmatpush.bf16.msra.mxu0 0
    %149 = vmatpush.bf16.msra.mxu0 %v127
    %150 = vmatpush.bf16.msra.mxu0 %v126
    %151 = vmatmul.bf16.gmra.mxu0 %v132
    %v152 = vpop.f32.mrf.mxu0
    %v153 = vadd.f32 %v99, %v152
    %v154 = vpop.f32.mrf.mxu0
    %v155 = vadd.f32 %v101, %v154
    %156 = vmatmul.bf16.gmra.mxu0 %v135
    %v157 = vpop.f32.mrf.mxu0
    %v158 = vadd.f32 %v104, %v157
    %v159 = vpop.f32.mrf.mxu0
    %v160 = vadd.f32 %v106, %v159
    %161 = vmatmul.bf16.gmra.mxu0 %v138
    %v162 = vpop.f32.mrf.mxu0
    %v163 = vadd.f32 %v109, %v162
    %v164 = vpop.f32.mrf.mxu0
    %v165 = vadd.f32 %v111, %v164
    %166 = vmatmul.bf16.gmra.mxu0 %v141
    %v167 = vpop.f32.mrf.mxu0
    %v168 = vadd.f32 %v114, %v167
    %v169 = vpop.f32.mrf.mxu0
    %v170 = vadd.f32 %v116, %v169
    %171 = vdwg.mxu0
    %v172 = vld [vmem:[%s4] sm:$0x1]
    %v174 = vperm.slane %v172, 0
    %v176 = vadd.f32 %v153, %v174
    %v177 = vadd.f32 %v155, %v174
    %v178 = vadd.f32 %v158, %v174
    %v179 = vadd.f32 %v160, %v174
    %v180 = vadd.f32 %v163, %v174
    %v181 = vadd.f32 %v165, %v174
    %v182 = vadd.f32 %v168, %v174
    %v183 = vadd.f32 %v170, %v174
    %v184 = vmax.f32 %v176, 0.0
    %v185 = vmax.f32 %v177, 0.0
    %v186 = vmax.f32 %v178, 0.0
    %v187 = vmax.f32 %v179, 0.0
    %v188 = vmax.f32 %v180, 0.0
    %v189 = vmax.f32 %v181, 0.0
    %v190 = vmax.f32 %v182, 0.0
    %v191 = vmax.f32 %v183, 0.0
    %v192 = vpack.c.bf16 %v185, %v184
    %v193 = vpack.c.bf16 %v187, %v186
    %v194 = vpack.c.bf16 %v189, %v188
    %v195 = vpack.c.bf16 %v191, %v190
    %v196 = vld [vmem:[%s5] sm:$0xf]
    %v197 = vld [vmem:[%s5 + $0x4] sm:$0xf]
    %v198 = vld [vmem:[%s5 + $0x8] sm:$0xf]
    %v199 = vld [vmem:[%s5 + $0xc] sm:$0xf]
    %v200 = vld [vmem:[%s5 + $0x10] sm:$0xf]
    %v201 = vld [vmem:[%s5 + $0x14] sm:$0xf]
    %v202 = vld [vmem:[%s5 + $0x18] sm:$0xf]
    %v203 = vld [vmem:[%s5 + $0x1c] sm:$0xf]
    %v204 = vld [vmem:[%s5 + $0x20] sm:$0xf]
    %v205 = vld [vmem:[%s5 + $0x24] sm:$0xf]
    %v206 = vld [vmem:[%s5 + $0x28] sm:$0xf]
    %v207 = vld [vmem:[%s5 + $0x2c] sm:$0xf]
    %v208 = vld [vmem:[%s5 + $0x30] sm:$0xf]
    %v209 = vld [vmem:[%s5 + $0x34] sm:$0xf]
    %v210 = vld [vmem:[%s5 + $0x38] sm:$0xf]
    %v211 = vld [vmem:[%s5 + $0x3c] sm:$0xf]
    %v212 = vld [vmem:[%s6] sm:$0x1]
    %v214 = vperm.slane %v212, 0
    %v232 = vunpack.c.l.b16 %v196
    %v233 = vunpack.c.l.b16 %v197
    %v234 = vunpack.c.l.b16 %v198
    %v235 = vunpack.c.l.b16 %v199
    %v236 = vunpack.c.l.b16 %v200
    %v237 = vunpack.c.l.b16 %v201
    %v238 = vunpack.c.l.b16 %v202
    %v239 = vunpack.c.l.b16 %v203
    %v240 = vunpack.c.l.b16 %v204
    %v241 = vunpack.c.l.b16 %v205
    %v242 = vunpack.c.l.b16 %v206
    %v243 = vunpack.c.l.b16 %v207
    %v244 = vunpack.c.l.b16 %v208
    %v245 = vunpack.c.l.b16 %v209
    %v246 = vunpack.c.l.b16 %v210
    %v247 = vunpack.c.l.b16 %v211
    %v248 = vpack.c.b16 %v233, %v232
    %v249 = vpack.c.b16 %v235, %v234
    %v250 = vpack.c.b16 %v237, %v236
    %v251 = vpack.c.b16 %v239, %v238
    %v252 = vpack.c.b16 %v241, %v240
    %v253 = vpack.c.b16 %v243, %v242
    %v254 = vpack.c.b16 %v245, %v244
    %v255 = vpack.c.b16 %v247, %v246
    %264 = vmatpush.bf16.msra.mxu0 %v255
    %265 = vmatpush.bf16.msra.mxu0 %v254
    %266 = vmatpush.bf16.msra.mxu0 %v253
    %267 = vmatpush.bf16.msra.mxu0 %v252
    %268 = vmatpush.bf16.msra.mxu0 %v251
    %269 = vmatpush.bf16.msra.mxu0 %v250
    %270 = vmatpush.bf16.msra.mxu0 %v249
    %271 = vmatpush.bf16.msra.mxu0 %v248
    %272 = vmatmul.bf16.gmra.mxu0 %v192
    %v273 = vpop.f32.mrf.mxu0
    %v274 = vadd.f32 %v214, %v273
    %v275 = vpop.f32.mrf.mxu0
    %v276 = vadd.f32 %v214, %v275
    %277 = vmatmul.bf16.gmra.mxu0 %v193
    %v278 = vpop.f32.mrf.mxu0
    %v279 = vadd.f32 %v214, %v278
    %v280 = vpop.f32.mrf.mxu0
    %v281 = vadd.f32 %v214, %v280
    %282 = vmatmul.bf16.gmra.mxu0 %v194
    %v283 = vpop.f32.mrf.mxu0
    %v284 = vadd.f32 %v214, %v283
    %v285 = vpop.f32.mrf.mxu0
    %v286 = vadd.f32 %v214, %v285
    %287 = vmatmul.bf16.gmra.mxu0 %v195
    %v288 = vpop.f32.mrf.mxu0
    %v289 = vadd.f32 %v214, %v288
    %v290 = vpop.f32.mrf.mxu0
    %v291 = vadd.f32 %v214, %v290
    %292 = vdwg.mxu0
    %v293 = vmax.f32 %v274, 0.0
    %v294 = vmax.f32 %v276, 0.0
    %v295 = vmax.f32 %v279, 0.0
    %v296 = vmax.f32 %v281, 0.0
    %v297 = vmax.f32 %v284, 0.0
    %v298 = vmax.f32 %v286, 0.0
    %v299 = vmax.f32 %v289, 0.0
    %v300 = vmax.f32 %v291, 0.0
    %v301 = vpack.c.bf16 %v294, %v293
    %v302 = vpack.c.bf16 %v296, %v295
    %v303 = vpack.c.bf16 %v298, %v297
    %v304 = vpack.c.bf16 %v300, %v299
    %v305 = vld [vmem:[%s7] sm:$0xf]
    %v306 = vld [vmem:[%s7 + $0x4] sm:$0xf]
    %v307 = vld [vmem:[%s7 + $0x8] sm:$0xf]
    %v308 = vld [vmem:[%s7 + $0xc] sm:$0xf]
    %v309 = vld [vmem:[%s7 + $0x10] sm:$0xf]
    %v310 = vld [vmem:[%s7 + $0x14] sm:$0xf]
    %v311 = vld [vmem:[%s7 + $0x18] sm:$0xf]
    %v312 = vld [vmem:[%s7 + $0x1c] sm:$0xf]
    %v313 = vld [vmem:[%s7 + $0x20] sm:$0xf]
    %v314 = vld [vmem:[%s7 + $0x24] sm:$0xf]
    %v315 = vld [vmem:[%s7 + $0x28] sm:$0xf]
    %v316 = vld [vmem:[%s7 + $0x2c] sm:$0xf]
    %v317 = vld [vmem:[%s7 + $0x30] sm:$0xf]
    %v318 = vld [vmem:[%s7 + $0x34] sm:$0xf]
    %v319 = vld [vmem:[%s7 + $0x38] sm:$0xf]
    %v320 = vld [vmem:[%s7 + $0x3c] sm:$0xf]
    %v321 = vld [vmem:[%s8] sm:$0x1]
    %v323 = vperm.slane %v321, 0
    %v341 = vunpack.c.l.b16 %v305
    %v342 = vunpack.c.l.b16 %v306
    %v343 = vunpack.c.l.b16 %v307
    %v344 = vunpack.c.l.b16 %v308
    %v345 = vunpack.c.l.b16 %v309
    %v346 = vunpack.c.l.b16 %v310
    %v347 = vunpack.c.l.b16 %v311
    %v348 = vunpack.c.l.b16 %v312
    %v349 = vunpack.c.l.b16 %v313
    %v350 = vunpack.c.l.b16 %v314
    %v351 = vunpack.c.l.b16 %v315
    %v352 = vunpack.c.l.b16 %v316
    %v353 = vunpack.c.l.b16 %v317
    %v354 = vunpack.c.l.b16 %v318
    %v355 = vunpack.c.l.b16 %v319
    %v356 = vunpack.c.l.b16 %v320
    %v357 = vpack.c.b16 %v342, %v341
    %v358 = vpack.c.b16 %v344, %v343
    %v359 = vpack.c.b16 %v346, %v345
    %v360 = vpack.c.b16 %v348, %v347
    %v361 = vpack.c.b16 %v350, %v349
    %v362 = vpack.c.b16 %v352, %v351
    %v363 = vpack.c.b16 %v354, %v353
    %v364 = vpack.c.b16 %v356, %v355
    %373 = vmatpush.bf16.msra.mxu0 %v364
    %374 = vmatpush.bf16.msra.mxu0 %v363
    %375 = vmatpush.bf16.msra.mxu0 %v362
    %376 = vmatpush.bf16.msra.mxu0 %v361
    %377 = vmatpush.bf16.msra.mxu0 %v360
    %378 = vmatpush.bf16.msra.mxu0 %v359
    %379 = vmatpush.bf16.msra.mxu0 %v358
    %380 = vmatpush.bf16.msra.mxu0 %v357
    %381 = vmatmul.bf16.gmra.mxu0 %v301
    %v382 = vpop.f32.mrf.mxu0
    %v383 = vadd.f32 %v323, %v382
    %v384 = vpop.f32.mrf.mxu0
    %v385 = vadd.f32 %v323, %v384
    %386 = vmatmul.bf16.gmra.mxu0 %v302
    %v387 = vpop.f32.mrf.mxu0
    %v388 = vadd.f32 %v323, %v387
    %v389 = vpop.f32.mrf.mxu0
    %v390 = vadd.f32 %v323, %v389
    %391 = vmatmul.bf16.gmra.mxu0 %v303
    %v392 = vpop.f32.mrf.mxu0
    %v393 = vadd.f32 %v323, %v392
    %v394 = vpop.f32.mrf.mxu0
    %v395 = vadd.f32 %v323, %v394
    %396 = vmatmul.bf16.gmra.mxu0 %v304
    %v397 = vpop.f32.mrf.mxu0
    %v398 = vadd.f32 %v323, %v397
    %v399 = vpop.f32.mrf.mxu0
    %v400 = vadd.f32 %v323, %v399
    %401 = vdwg.mxu0
    %v402 = vmax.f32 %v383, 0.0
    %v403 = vmax.f32 %v385, 0.0
    %v404 = vmax.f32 %v388, 0.0
    %v405 = vmax.f32 %v390, 0.0
    %v406 = vmax.f32 %v393, 0.0
    %v407 = vmax.f32 %v395, 0.0
    %v408 = vmax.f32 %v398, 0.0
    %v409 = vmax.f32 %v400, 0.0
    %v410 = vpack.c.bf16 %v403, %v402
    %v411 = vpack.c.bf16 %v405, %v404
    %v412 = vpack.c.bf16 %v407, %v406
    %v413 = vpack.c.bf16 %v409, %v408
    %v414 = vld [vmem:[%s9] sm:$0xf]
    %v415 = vld [vmem:[%s9 + $0x4] sm:$0xf]
    %v416 = vld [vmem:[%s9 + $0x8] sm:$0xf]
    %v417 = vld [vmem:[%s9 + $0xc] sm:$0xf]
    %v418 = vld [vmem:[%s9 + $0x10] sm:$0xf]
    %v419 = vld [vmem:[%s9 + $0x14] sm:$0xf]
    %v420 = vld [vmem:[%s9 + $0x18] sm:$0xf]
    %v421 = vld [vmem:[%s9 + $0x1c] sm:$0xf]
    %v422 = vld [vmem:[%s9 + $0x20] sm:$0xf]
    %v423 = vld [vmem:[%s9 + $0x24] sm:$0xf]
    %v424 = vld [vmem:[%s9 + $0x28] sm:$0xf]
    %v425 = vld [vmem:[%s9 + $0x2c] sm:$0xf]
    %v426 = vld [vmem:[%s9 + $0x30] sm:$0xf]
    %v427 = vld [vmem:[%s9 + $0x34] sm:$0xf]
    %v428 = vld [vmem:[%s9 + $0x38] sm:$0xf]
    %v429 = vld [vmem:[%s9 + $0x3c] sm:$0xf]
    %v430 = vld [vmem:[%s10] sm:$0x1]
    %v432 = vperm.slane %v430, 0
    %v450 = vunpack.c.l.b16 %v414
    %v451 = vunpack.c.l.b16 %v415
    %v452 = vunpack.c.l.b16 %v416
    %v453 = vunpack.c.l.b16 %v417
    %v454 = vunpack.c.l.b16 %v418
    %v455 = vunpack.c.l.b16 %v419
    %v456 = vunpack.c.l.b16 %v420
    %v457 = vunpack.c.l.b16 %v421
    %v458 = vunpack.c.l.b16 %v422
    %v459 = vunpack.c.l.b16 %v423
    %v460 = vunpack.c.l.b16 %v424
    %v461 = vunpack.c.l.b16 %v425
    %v462 = vunpack.c.l.b16 %v426
    %v463 = vunpack.c.l.b16 %v427
    %v464 = vunpack.c.l.b16 %v428
    %v465 = vunpack.c.l.b16 %v429
    %v466 = vpack.c.b16 %v451, %v450
    %v467 = vpack.c.b16 %v453, %v452
    %v468 = vpack.c.b16 %v455, %v454
    %v469 = vpack.c.b16 %v457, %v456
    %v470 = vpack.c.b16 %v459, %v458
    %v471 = vpack.c.b16 %v461, %v460
    %v472 = vpack.c.b16 %v463, %v462
    %v473 = vpack.c.b16 %v465, %v464
    %482 = vmatpush.bf16.msra.mxu0 %v473
    %483 = vmatpush.bf16.msra.mxu0 %v472
    %484 = vmatpush.bf16.msra.mxu0 %v471
    %485 = vmatpush.bf16.msra.mxu0 %v470
    %486 = vmatpush.bf16.msra.mxu0 %v469
    %487 = vmatpush.bf16.msra.mxu0 %v468
    %488 = vmatpush.bf16.msra.mxu0 %v467
    %489 = vmatpush.bf16.msra.mxu0 %v466
    %490 = vmatmul.bf16.gmra.mxu0 %v410
    %v491 = vpop.f32.mrf.mxu0
    %v492 = vadd.f32 %v432, %v491
    %v493 = vpop.f32.mrf.mxu0
    %v494 = vadd.f32 %v432, %v493
    %495 = vmatmul.bf16.gmra.mxu0 %v411
    %v496 = vpop.f32.mrf.mxu0
    %v497 = vadd.f32 %v432, %v496
    %v498 = vpop.f32.mrf.mxu0
    %v499 = vadd.f32 %v432, %v498
    %500 = vmatmul.bf16.gmra.mxu0 %v412
    %v501 = vpop.f32.mrf.mxu0
    %v502 = vadd.f32 %v432, %v501
    %v503 = vpop.f32.mrf.mxu0
    %v504 = vadd.f32 %v432, %v503
    %505 = vmatmul.bf16.gmra.mxu0 %v413
    %v506 = vpop.f32.mrf.mxu0
    %v507 = vadd.f32 %v432, %v506
    %v508 = vpop.f32.mrf.mxu0
    %v509 = vadd.f32 %v432, %v508
    %510 = vdwg.mxu0
    %511 = vxpose.xlu0.b32.start [1/16] %v492, 128
    %512 = vxpose.xlu0.b32.cont [2/16] %v494, 128
    %513 = vxpose.xlu0.b32.cont [3/16] %v497, 128
    %514 = vxpose.xlu0.b32.cont [4/16] %v499, 128
    %515 = vxpose.xlu0.b32.cont [5/16] %v502, 128
    %516 = vxpose.xlu0.b32.cont [6/16] %v504, 128
    %517 = vxpose.xlu0.b32.cont [7/16] %v507, 128
    %518 = vxpose.xlu0.b32.cont [8/16] %v509, 128
    %519 = vxpose.xlu0.b32.cont [9/16] 0.0, 128
    %520 = vxpose.xlu0.b32.cont [10/16] 0.0, 128
    %521 = vxpose.xlu0.b32.cont [11/16] 0.0, 128
    %522 = vxpose.xlu0.b32.cont [12/16] 0.0, 128
    %523 = vxpose.xlu0.b32.cont [13/16] 0.0, 128
    %524 = vxpose.xlu0.b32.cont [14/16] 0.0, 128
    %525 = vxpose.xlu0.b32.cont [15/16] 0.0, 128
    %526 = vxpose.xlu0.b32.end [16/16] 0.0, 128
    %v527 = vpop.trf.xlu0
    %v528 = vpop.trf.xlu0
    %v529 = vpop.trf.xlu0
    %v530 = vpop.trf.xlu0
    %v531 = vpop.trf.xlu0
    %v532 = vpop.trf.xlu0
    %v533 = vpop.trf.xlu0
    %v534 = vpop.trf.xlu0
    %v535 = vpop.trf.xlu0
    %v536 = vpop.trf.xlu0
    %v537 = vpop.trf.xlu0
    %v538 = vpop.trf.xlu0
    %v539 = vpop.trf.xlu0
    %v540 = vpop.trf.xlu0
    %v541 = vpop.trf.xlu0
    %v542 = vpop.trf.xlu0
    %vm543 = vcmask 523264
    %544 = vst.msk [vmem:[#allocation2] sm:$0xff] %vm543, %v527
    // Predicated region
    $region46: #{tpu_custom_call.1} parent=1 // pred_check
      _
    $region47: #{tpu_custom_call.1} parent=1 // pred_check_branch
      %546 = sbr.rel (0) target = $region49
    $region48: #{tpu_custom_call.1} parent=1 // pred_region
      %548 = vsyncadd [#allocation3], 0
      %s550 = sshll.u32 [#allocation2], 4
      %s551 = int_to_ptr.vmem [resolvable:$true] %s550
      %s552 = sshll.u32 %s11, 4
      %s553 = int_to_ptr.hbm [resolvable:$true] %s552
      %555 = dma.vmem_to_hbm [thread:$0]  %s551, 128, %s553, [#allocation3]
    $region49: #{tpu_custom_call.1} parent=1 // pred_fallthru
      _
    // Predicated region
    $region50: #{tpu_custom_call.1} parent=1 // pred_check
      _
    $region51: #{tpu_custom_call.1} parent=1 // pred_check_branch
      %557 = sbr.rel (0) target = $region53
    $region52: #{tpu_custom_call.1} parent=1 // pred_region
      %559 = dma.done [#allocation3], 128
    $region53: #{tpu_custom_call.1} parent=1 // pred_fallthru
      _
    %560 = vsyncpa [#allocation3], 1

</llo_original>
